<compile_context>
chip_gen: v7x
topology: tpu7x:2x2x1
jax: 0.10.0
libtpu: 0.0.40
codegen_flags: <defaults>
</compile_context>

<pallas_src>
import functools

import jax
import jax.numpy as jnp
from jax.experimental import pallas as pl
from jax.experimental.pallas import tpu as pltpu


# ------------------------------- Budgets ------------------------------------

_VMEM_LIMIT_BYTES = 48 * 1024 * 1024   # explicit scoped-VMEM cap (safe on v5e/v6e/v7x)
_VMEM_TILE_BUDGET = 40 * 1024 * 1024   # what the tile picker may consume (headroom kept)
_RESIDENT_W_BYTES = 16 * 1024 * 1024   # keep whole W^T (bf16) resident up to this size


def _two_core_chip():
    # v7x has 2 TensorCores per chip; splitting the N axis lets both cores share the
    # weight fetch on the latency-critical small-batch path.
    try:
        return "v7" in jax.devices()[0].device_kind.lower()
    except Exception:  # pragma: no cover - defensive
        return False


_TWO_CORE_CHIP = _two_core_chip()


# ----------------------------- Pallas kernel --------------------------------

def _linear_tanh_kernel(x_ref, wt_ref, b_ref, o_ref):
    # x_ref : [TB, D]      f32 tile of embeddings
    # wt_ref: [D, TN]      bf16 pre-transposed weight tile (resident across batch tiles)
    # b_ref : [1, TN]      f32 bias tile
    # o_ref : [TB, TN]     output tile (f32 by default, bf16 optional)
    x = x_ref[...].astype(jnp.bfloat16)               # bf16 MXU operands
    y = jnp.dot(x, wt_ref[...], preferred_element_type=jnp.float32)
    y = y + b_ref[...]                                # f32 epilogue (VPU/EUP friendly on v5e)
    o_ref[...] = jnp.tanh(y).astype(o_ref.dtype)


# ------------------------------ Tiling logic ---------------------------------

def _pick_tiles(B, D, split_n_for_cores):
    """Choose (tile_b, tile_n) under the VMEM budget (double-buffered)."""
    # ---- N (output-feature) tiling ----
    if D * D * 2 <= _RESIDENT_W_BYTES:
        tile_n = D                          # whole W^T resident
    else:
        tile_n = D
        for cand in (2048, 1024, 512, 256, 128):
            if D % cand == 0:
                tile_n = cand
                break
        # TODO(synk): if D is not a multiple of 128 AND W^T (bf16) exceeds the VMEM
        # budget we still fall back to tile_n=D; very large non-aligned D would need
        # an N-padding (or pl.Buffered(1) on the weight spec) to stay portable.

    # v7x latency path: split N so both TensorCores each fetch half of W^T.
    if split_n_for_cores and B <= 256 and tile_n == D and D % 256 == 0:
        tile_n = D // 2

    # ---- batch tiling: largest candidate <= B that fits the budget ----
    for cand in (1024, 512, 256, 128, 64, 32, 16, 8):
        if cand > B:
            continue
        footprint = (2 * cand * D * 4          # x tile,  double buffered, f32
                     + 2 * cand * tile_n * 4   # out tile, double buffered, f32
                     + 2 * D * tile_n * 2      # W^T tile, double buffered, bf16
                     + 2 * tile_n * 4)         # bias tile
        if footprint <= _VMEM_TILE_BUDGET:
            return cand, tile_n
    return 8, tile_n


# ------------------------------ Glue / wrapper -------------------------------

@functools.partial(jax.jit, static_argnames=("tile_b", "tile_n", "out_dtype"))
def _linear_tanh_call(x, wt_bf16, b2, tile_b, tile_n, out_dtype):
    B, D = x.shape
    grid_b = pl.cdiv(B, tile_b)      # ragged last block: Pallas masks OOB rows, no pad/slice
    grid_n = D // tile_n

    return pl.pallas_call(
        _linear_tanh_kernel,
        out_shape=jax.ShapeDtypeStruct((B, D), out_dtype),
        grid_spec=pltpu.PrefetchScalarGridSpec(
            num_scalar_prefetch=0,
            # Weight-tile axis outermost so each W^T column block is DMA'd once and
            # stays resident while batch tiles stream past it on the inner axis.
            grid=(grid_n, grid_b),
            in_specs=[
                pl.BlockSpec((tile_b, D), lambda j, i: (i, 0)),      # x tile (f32)
                pl.BlockSpec((D, tile_n), lambda j, i: (0, j)),      # W^T tile (bf16)
                pl.BlockSpec((1, tile_n), lambda j, i: (0, j)),      # bias tile (f32)
            ],
            out_specs=pl.BlockSpec((tile_b, tile_n), lambda j, i: (i, j)),
        ),
        compiler_params=pltpu.CompilerParams(
            dimension_semantics=("parallel", "parallel"),
            vmem_limit_bytes=_VMEM_LIMIT_BYTES),
    )(x, wt_bf16, b2)


def linear_tanh_pallas(x, wt_bf16, b2, out_dtype=None):
    """tanh(x @ W^T + b) with W^T pre-transposed & stored in bf16.

    x       : [B, D] float32
    wt_bf16 : [D, D] bfloat16 (already transposed: [in, out])
    b2      : [1, D] float32
    """
    B, D = x.shape
    out_dtype = x.dtype if out_dtype is None else out_dtype

    # Only the sub-sublane case is padded (cheap); everything else uses ragged blocks.
    orig_b = B
    if B < 8:
        x = jnp.pad(x, ((0, 8 - B), (0, 0)))
        B = 8

    tile_b, tile_n = _pick_tiles(B, D, _TWO_CORE_CHIP)
    out = _linear_tanh_call(x, wt_bf16, b2, tile_b, tile_n, out_dtype)

    if orig_b != B:
        out = out[:orig_b]
    return out


# --------------------------- Module equivalent -------------------------------

class AdaptiveContradictionEngine:
    """JAX/Pallas port of the PyTorch AdaptiveContradictionEngine."""

    def __init__(self, embedding_dim=768, key=None, out_dtype=jnp.float32):
        self.embedding_dim = embedding_dim
        # Learnable scalar thresholds (same init values as the PyTorch module), kept as
        # Python floats: no blocking device->host sync on every forward call.
        self.pos_sent_thresh = 0.1
        self.neg_sent_thresh = -0.1
        self.drop_thresh = 0.01
        self.rise_thresh = 0.01
        # Set out_dtype=jnp.bfloat16 if downstream tolerates it (halves output HBM writes).
        self.out_dtype = out_dtype

        # nn.Linear(embedding_dim, embedding_dim), deterministic init mimicking
        # PyTorch's kaiming-uniform default bounds.
        if key is None:
            key = jax.random.PRNGKey(0)
        kw, kb = jax.random.split(key)
        bound = 1.0 / (embedding_dim ** 0.5)
        self.weight = jax.random.uniform(
            kw, (embedding_dim, embedding_dim), jnp.float32, -bound, bound)
        self.bias = jax.random.uniform(
            kb, (embedding_dim,), jnp.float32, -bound, bound)

        # Kernel-ready parameters, prepared ONCE (no per-call transpose / reshape):
        #  - weight transposed to [in, out] and cast to bf16 (halves weight HBM traffic)
        #  - bias reshaped to [1, D]
        # TODO(synk): int8 (v5e/v6e) or fp8 (v7x) weight quantization would halve the
        # weight stream again on the small-batch latency path.
        self.wt_bf16 = jnp.asarray(self.weight.T, dtype=jnp.bfloat16)
        self.bias2 = self.bias.reshape(1, embedding_dim)

    def forward(self, finbert_embedding, technical_features,
                price_movement, news_sentiment_score):
        sentiment = float(news_sentiment_score)
        movement = float(price_movement)
        print('ContradictionEngine Debug:')
        print(f'  Sentiment: {sentiment}, Price Movement: {movement}')
        print(f'  Thresholds -> pos: {self.pos_sent_thresh}, '
              f'neg: {self.neg_sent_thresh}, '
              f'drop: {self.drop_thresh}, '
              f'rise: {self.rise_thresh}')

        contradiction_detected = False
        contradiction_type = None
        if sentiment > self.pos_sent_thresh and movement < -self.drop_thresh:
            contradiction_detected = True
            contradiction_type = 'overhype'
        elif sentiment < self.neg_sent_thresh and movement > self.rise_thresh:
            contradiction_detected = True
            contradiction_type = 'underhype'

        if contradiction_detected:
            print(f'  Contradiction detected: {contradiction_type}')
            x = finbert_embedding
            squeeze = x.ndim == 1
            if squeeze:                          # single embedding vector supported
                x = x[None, :]
            updated = linear_tanh_pallas(x, self.wt_bf16, self.bias2,
                                         out_dtype=self.out_dtype)
            if squeeze:
                updated = updated[0]
            return updated, contradiction_type
        else:
            print('  No contradiction detected.')
            return finbert_embedding, None

    __call__ = forward


# --------------------------------- Main --------------------------------------

if __name__ == "__main__":
    key = jax.random.PRNGKey(0)
    k_emb, k_tech, k_params = jax.random.split(key, 3)

    EMB_DIM = 128     # small embedding dim consistent with the module (default 768)
    BATCH = 8

    finbert_embedding = jax.random.normal(k_emb, (BATCH, EMB_DIM), jnp.float32)
    technical_features = jax.random.normal(k_tech, (BATCH, 16), jnp.float32)  # unused by forward
    news_sentiment_score = 0.5     # > pos_sent_thresh
    price_movement = -0.05         # < -drop_thresh  -> 'overhype' contradiction

    engine = AdaptiveContradictionEngine(embedding_dim=EMB_DIM, key=k_params)
    ref_full = jnp.tanh(finbert_embedding @ engine.weight.T + engine.bias)

    # 1) Batched 'overhype' path through the Pallas kernel.
    out_emb, ctype = engine(finbert_embedding, technical_features,
                            price_movement, news_sentiment_score)
    out_emb = jax.block_until_ready(out_emb)
    assert ctype == 'overhype'
    # bf16 matmul operands -> loose tolerance vs the f32 reference.
    assert jnp.allclose(out_emb, ref_full, atol=2e-2, rtol=2e-2)

    # 2) Single-vector 'underhype' path (B=1 padded to the sublane minimum internally).
    single = finbert_embedding[0]
    out_single, ctype_s = engine(single, technical_features[0], 0.05, -0.5)
    out_single = jax.block_until_ready(out_single)
    assert ctype_s == 'underhype'
    assert out_single.shape == (EMB_DIM,)
    assert jnp.allclose(out_single, ref_full[0], atol=2e-2, rtol=2e-2)

    # 3) Ragged batch (B not a multiple of the tile): exercised via masked last block.
    ragged = jnp.concatenate(
        [finbert_embedding, finbert_embedding[:5] * 0.5], axis=0)   # B = 13
    out_ragged, ctype_r = engine(ragged, technical_features,
                                 price_movement, news_sentiment_score)
    out_ragged = jax.block_until_ready(out_ragged)
    ref_ragged = jnp.tanh(ragged @ engine.weight.T + engine.bias)
    assert ctype_r == 'overhype'
    assert out_ragged.shape == (13, EMB_DIM)
    assert jnp.allclose(out_ragged, ref_ragged, atol=2e-2, rtol=2e-2)

    # 4) No-contradiction branch (embedding passes through untouched).
    out2, ctype2 = engine(finbert_embedding, technical_features, 0.02, 0.0)
    out2 = jax.block_until_ready(out2)
    assert ctype2 is None
    assert jnp.allclose(out2, finbert_embedding)

    print("KERNEL_OK")
</pallas_src>

<mosaic_0001>
module attributes {stable_mosaic.version = 11 : i64} {
  func.func @_linear_tanh_kernel(%arg0: i32, %arg1: i32, %arg2: memref<8x128xf32, #tpu.memory_space<vmem>>, %arg3: memref<128x128xbf16, #tpu.memory_space<vmem>>, %arg4: memref<1x128xf32, #tpu.memory_space<vmem>>, %arg5: memref<8x128xf32, #tpu.memory_space<vmem>>) attributes {dimension_semantics = [#tpu.dimension_semantics<parallel>, #tpu.dimension_semantics<parallel>], iteration_bounds = array<i64: 1, 1>, scalar_prefetch = 0 : i64, scratch_operands = 0 : i64, tpu.core_type = #tpu.core_type<tc>, window_params = [{transform_indices = @transform_0, window_bounds = array<i64: 8, 128>}, {transform_indices = @transform_1, window_bounds = array<i64: 128, 128>}, {transform_indices = @transform_2, window_bounds = array<i64: 1, 128>}, {transform_indices = @transform_3, window_bounds = array<i64: 8, 128>}]} {
    %c0 = arith.constant 0 : index
    %c0_0 = arith.constant 0 : index
    %0 = vector.load %arg2[%c0, %c0_0] : memref<8x128xf32, #tpu.memory_space<vmem>>, vector<8x128xf32>
    %1 = arith.truncf %0 : vector<8x128xf32> to vector<8x128xbf16>
    %c0_1 = arith.constant 0 : index
    %c0_2 = arith.constant 0 : index
    %2 = vector.load %arg3[%c0_1, %c0_2] : memref<128x128xbf16, #tpu.memory_space<vmem>>, vector<128x128xbf16>
    %cst = arith.constant dense<0.000000e+00> : vector<8x128xf32>
    %3 = tpu.matmul %1, %2, %cst {dimension_numbers = #tpu.dot_dimension_numbers<[1], [0], [0], [1], [0, 0, 1, 1], [], []>} : vector<8x128xbf16>, vector<128x128xbf16>, vector<8x128xf32> -> vector<8x128xf32>
    %c0_3 = arith.constant 0 : index
    %c0_4 = arith.constant 0 : index
    %4 = vector.load %arg4[%c0_3, %c0_4] : memref<1x128xf32, #tpu.memory_space<vmem>>, vector<1x128xf32>
    %5 = vector.broadcast %4 : vector<1x128xf32> to vector<8x128xf32>
    %6 = arith.addf %3, %5 : vector<8x128xf32>
    %7 = math.tanh %6 : vector<8x128xf32>
    %c0_5 = arith.constant 0 : index
    %c0_6 = arith.constant 0 : index
    %8 = vector.load %arg5[%c0_5, %c0_6] : memref<8x128xf32, #tpu.memory_space<vmem>>, vector<8x128xf32>
    tpu.vector_store %arg5[%c0_5, %c0_6], %7 {strides = array<i32>} : memref<8x128xf32, #tpu.memory_space<vmem>>, vector<8x128xf32>,
    return
  }
  func.func @transform_0(%arg0: i32, %arg1: i32) -> (i32, i32) {
    %c0_i32 = arith.constant 0 : i32
    %c0_i32_0 = arith.constant 0 : i32
    return %arg1, %c0_i32 : i32, i32
  }
  func.func @transform_1(%arg0: i32, %arg1: i32) -> (i32, i32) {
    %c0_i32 = arith.constant 0 : i32
    %c0_i32_0 = arith.constant 0 : i32
    return %c0_i32, %arg0 : i32, i32
  }
  func.func @transform_2(%arg0: i32, %arg1: i32) -> (i32, i32) {
    %c0_i32 = arith.constant 0 : i32
    %c0_i32_0 = arith.constant 0 : i32
    return %c0_i32, %arg0 : i32, i32
  }
  func.func @transform_3(%arg0: i32, %arg1: i32) -> (i32, i32) {
    %c0_i32 = arith.constant 0 : i32
    return %arg1, %arg0 : i32, i32
  }
}

</mosaic_0001>

<llo_original>
// kernel: _linear_tanh_call.1
$region0: #{_linear_tanh_call.1}
  #allocation0 [shape = 'u32[]', space=smem, size = 0x4, offset = 0x4, fixed_abs, tag = 'smem constant byte address 0x4 - core index']
  #allocation1 [shape = 'u32[144,128]{1,0:T(1,128)}', space=vmem, size = 0x12000, scoped, tag = 'internal scratch']
  %s0 = inlined_call_operand.hbm [shape: f32[8,128], index: 0, kind: input, shape index: {}]
  %s1 = inlined_call_operand.hbm [shape: bf16[128,128], index: 1, kind: input, shape index: {}]
  %s2 = inlined_call_operand.vmem [shape: f32[1,128], index: 2, kind: input, shape index: {}]
  %s3 = inlined_call_operand.hbm [shape: f32[8,128], index: 3, kind: output, shape index: {}]
  %s4 = sld [smem:[#allocation0]]
  $region30: #{_linear_tanh_call.1} parent=0
    _
  %s6 = ssub.s32 1, %s4
  %s7 = scalar_select 0, %s6, %s4
  $region1: #{_linear_tanh_call.1} parent=0
    #allocation2 [shape = 'u8[4096]{0}', space=vmem, size = 0x1000, scoped, tag = 'input window, operand 0, single buffered']
    #allocation3 [shape = 's32[1]{0}', space=sflag, size = 0x4, scoped, tag = 'scoped memory for _linear_tanh_call.1']
    #allocation4 [shape = 's32[1]{0}', space=sflag, size = 0x4, scoped, tag = 'scoped memory for _linear_tanh_call.1']
    #allocation5 [shape = 'u8[32768]{0}', space=vmem, size = 0x8000, scoped, tag = 'input window, operand 1, single buffered']
    #allocation6 [shape = 's32[1]{0}', space=sflag, size = 0x4, scoped, tag = 'scoped memory for _linear_tanh_call.1']
    #allocation7 [shape = 'u8[4096]{0}', space=vmem, size = 0x1000, scoped, tag = 'output window, operand 0, single buffered']
    %8 = vsyncpa [#allocation3], 0
    %9 = vsyncpa [#allocation6], 0
    %10 = vsyncpa [#allocation4], 0
    // Predicated region
    $region2: #{_linear_tanh_call.1} parent=1 // pred_check
      _
    $region3: #{_linear_tanh_call.1} parent=1 // pred_check_branch
      %12 = sbr.rel (0) target = $region5
    $region4: #{_linear_tanh_call.1} parent=1 // pred_region
      %s14 = ssub.s32 128, 128
      %15 = vsyncadd [#allocation3], %s14
      %s17 = sshll.u32 [#allocation2], 4
      %s18 = int_to_ptr.vmem [resolvable:$true] %s17
      %20 = dma.hbm_to_vmem [thread:$0]  %s0, 128, %s18, [#allocation3]
    $region5: #{_linear_tanh_call.1} parent=1 // pred_fallthru
      _
    // Predicated region
    $region6: #{_linear_tanh_call.1} parent=1 // pred_check
      _
    $region7: #{_linear_tanh_call.1} parent=1 // pred_check_branch
      %22 = sbr.rel (0) target = $region9
    $region8: #{_linear_tanh_call.1} parent=1 // pred_region
      %s24 = ssub.s32 1024, 1024
      %25 = vsyncadd [#allocation6], %s24
      %s26 = sshll.u32 [#allocation5], 4
      %s27 = int_to_ptr.vmem [resolvable:$true] %s26
      %32 = dma.hbm_to_vmem [thread:$0]  %s1, 1024, %s27, [#allocation6], 64, 64, 4
    $region9: #{_linear_tanh_call.1} parent=1 // pred_fallthru
      _
    // Predicated region
    $region10: #{_linear_tanh_call.1} parent=1 // pred_check
      _
    $region11: #{_linear_tanh_call.1} parent=1 // pred_check_branch
      %34 = sbr.rel (0) target = $region13
    $region12: #{_linear_tanh_call.1} parent=1 // pred_region
      _
    $region13: #{_linear_tanh_call.1} parent=1 // pred_fallthru
      _
    // Predicated region
    $region14: #{_linear_tanh_call.1} parent=1 // pred_check
      _
    $region15: #{_linear_tanh_call.1} parent=1 // pred_check_branch
      %36 = sbr.rel (0) target = $region17
    $region16: #{_linear_tanh_call.1} parent=1 // pred_region
      %37 = dma.done [#allocation3], 128
    $region17: #{_linear_tanh_call.1} parent=1 // pred_fallthru
      _
    // Predicated region
    $region18: #{_linear_tanh_call.1} parent=1 // pred_check
      _
    $region19: #{_linear_tanh_call.1} parent=1 // pred_check_branch
      %39 = sbr.rel (0) target = $region21
    $region20: #{_linear_tanh_call.1} parent=1 // pred_region
      %40 = dma.done [#allocation6], 1024
    $region21: #{_linear_tanh_call.1} parent=1 // pred_fallthru
      _
    %v42 = vld [vmem:[#allocation2] sm:$0xff]
    %v43 = vpack.c.bf16 %v42, %v42
    %v44 = vld [vmem:[#allocation5] sm:$0xf]
    %v45 = vld [vmem:[#allocation5 + $0x4] sm:$0xf]
    %v46 = vld [vmem:[#allocation5 + $0x8] sm:$0xf]
    %v47 = vld [vmem:[#allocation5 + $0xc] sm:$0xf]
    %v48 = vld [vmem:[#allocation5 + $0x10] sm:$0xf]
    %v49 = vld [vmem:[#allocation5 + $0x14] sm:$0xf]
    %v50 = vld [vmem:[#allocation5 + $0x18] sm:$0xf]
    %v51 = vld [vmem:[#allocation5 + $0x1c] sm:$0xf]
    %v52 = vld [vmem:[#allocation5 + $0x20] sm:$0xf]
    %v53 = vld [vmem:[#allocation5 + $0x24] sm:$0xf]
    %v54 = vld [vmem:[#allocation5 + $0x28] sm:$0xf]
    %v55 = vld [vmem:[#allocation5 + $0x2c] sm:$0xf]
    %v56 = vld [vmem:[#allocation5 + $0x30] sm:$0xf]
    %v57 = vld [vmem:[#allocation5 + $0x34] sm:$0xf]
    %v58 = vld [vmem:[#allocation5 + $0x38] sm:$0xf]
    %v59 = vld [vmem:[#allocation5 + $0x3c] sm:$0xf]
    %v60 = vld [vmem:[%s2] sm:$0x1]
    %v62 = vlaneseq
    %v63 = vshrl.u32 %v62, 7
    %v64 = vsub.s32 0, %v63
    %v65 = vrot.slane %v60, %v64
    %v83 = vunpack.c.l.b16 %v44
    %v84 = vunpack.c.l.b16 %v45
    %v85 = vunpack.c.l.b16 %v46
    %v86 = vunpack.c.l.b16 %v47
    %v87 = vunpack.c.l.b16 %v48
    %v88 = vunpack.c.l.b16 %v49
    %v89 = vunpack.c.l.b16 %v50
    %v90 = vunpack.c.l.b16 %v51
    %v91 = vunpack.c.l.b16 %v52
    %v92 = vunpack.c.l.b16 %v53
    %v93 = vunpack.c.l.b16 %v54
    %v94 = vunpack.c.l.b16 %v55
    %v95 = vunpack.c.l.b16 %v56
    %v96 = vunpack.c.l.b16 %v57
    %v97 = vunpack.c.l.b16 %v58
    %v98 = vunpack.c.l.b16 %v59
    %v99 = vpack.c.b16 %v84, %v83
    %v100 = vpack.c.b16 %v86, %v85
    %v101 = vpack.c.b16 %v88, %v87
    %v102 = vpack.c.b16 %v90, %v89
    %v103 = vpack.c.b16 %v92, %v91
    %v104 = vpack.c.b16 %v94, %v93
    %v105 = vpack.c.b16 %v96, %v95
    %v106 = vpack.c.b16 %v98, %v97
    %115 = vmatprep.subr.bf16.mxu0 0
    %116 = vmatpush1.bf16.msra.mxu0 %v99
    %117 = vmatprep.subr.bf16.mxu0 0
    %118 = vmatpush1.bf16.msra.mxu0 %v100
    %119 = vmatprep.subr.bf16.mxu0 0
    %120 = vmatpush1.bf16.msra.mxu0 %v101
    %121 = vmatprep.subr.bf16.mxu0 0
    %122 = vmatpush1.bf16.msra.mxu0 %v102
    %123 = vmatprep.subr.bf16.mxu0 0
    %124 = vmatpush1.bf16.msra.mxu0 %v103
    %125 = vmatprep.subr.bf16.mxu0 0
    %126 = vmatpush1.bf16.msra.mxu0 %v104
    %127 = vmatprep.subr.bf16.mxu0 0
    %128 = vmatpush1.bf16.msra.mxu0 %v105
    %129 = vmatprep.subr.bf16.mxu0 0
    %130 = vmatpush1.bf16.msra.mxu0 %v106
    %131 = vmatprep.subr.bf16.mxu0 0
    %132 = vmatpush1.bf16.msra.mxu0 0
    %133 = vmatprep.subr.bf16.mxu0 0
    %134 = vmatpush1.bf16.msra.mxu0 0
    %135 = vmatprep.subr.bf16.mxu0 0
    %136 = vmatpush1.bf16.msra.mxu0 0
    %137 = vmatprep.subr.bf16.mxu0 0
    %138 = vmatpush1.bf16.msra.mxu0 0
    %139 = vmatprep.subr.bf16.mxu0 0
    %140 = vmatpush1.bf16.msra.mxu0 0
    %141 = vmatprep.subr.bf16.mxu0 0
    %142 = vmatpush1.bf16.msra.mxu0 0
    %143 = vmatprep.subr.bf16.mxu0 0
    %144 = vmatpush1.bf16.msra.mxu0 0
    %145 = vmatprep.subr.bf16.mxu0 0
    %146 = vmatpush1.bf16.msra.mxu0 0
    %147 = vmatprep.mubr.bf16.mxu0 0
    %148 = vmatmul.mubr.bf16.gmra.mrb[0].mxu0 %v43
    %v149 = vpop.f32.mrb[0].mxu0
    %v150 = vadd.f32 %v65, %v149
    %v151 = vpop.f32.mrb[0].mxu0
    %v152 = vpop.f32.mrb[0].mxu0
    %v153 = vpop.f32.mrb[0].mxu0
    %154 = vdwg.mxu0
    %v155 = vtanh.pop %v150
    %156 = vst [vmem:[#allocation7] sm:$0xff] %v155
    // Predicated region
    $region22: #{_linear_tanh_call.1} parent=1 // pred_check
      _
    $region23: #{_linear_tanh_call.1} parent=1 // pred_check_branch
      %158 = sbr.rel (0) target = $region25
    $region24: #{_linear_tanh_call.1} parent=1 // pred_region
      %s160 = ssub.s32 128, 128
      %161 = vsyncadd [#allocation4], %s160
      %s163 = sshll.u32 [#allocation7], 4
      %s164 = int_to_ptr.vmem [resolvable:$true] %s163
      %166 = dma.vmem_to_hbm [thread:$0]  %s164, 128, %s3, [#allocation4]
    $region25: #{_linear_tanh_call.1} parent=1 // pred_fallthru
      _
    // Predicated region
    $region26: #{_linear_tanh_call.1} parent=1 // pred_check
      _
    $region27: #{_linear_tanh_call.1} parent=1 // pred_check_branch
      %168 = sbr.rel (0) target = $region29
    $region28: #{_linear_tanh_call.1} parent=1 // pred_region
      %169 = dma.done [#allocation4], 128
    $region29: #{_linear_tanh_call.1} parent=1 // pred_fallthru
      _
    %170 = vsyncpa [#allocation3], 1
    %171 = vsyncpa [#allocation6], 1
    %172 = vsyncpa [#allocation4], 1

</llo_original>
